<compile_context>
chip_gen: v5e
topology: v5e:2x2
jax: 0.10.0
libtpu: 0.0.40
codegen_flags: <defaults>
</compile_context>

<pallas_src>
import functools
import math

import jax
import jax.numpy as jnp
from jax.experimental import pallas as pl
from jax.experimental.pallas import tpu as pltpu

_LANES = 128
_SUBLANES = 8


def _cdiv(a, b):
    return -(-a // b)


def _round_up(a, m):
    return _cdiv(a, m) * m


def _masked_mse_kernel(pred_ref, actual_ref, mask_ref, acc_ref, *, acc_rows):
    t = pl.program_id(1)

    @pl.when(t == 0)
    def _init():
        acc_ref[...] = jnp.zeros_like(acc_ref)

    diff = pred_ref[...] - actual_ref[...]
    m = mask_ref[...]
    masked_sq = diff * diff * m

    # Fold the (TM, 128) tile into (ACC_ROWS, 128) accumulators with pure VPU
    # elementwise adds (no per-tile XLU reduce).  ACC_ROWS/8 independent vreg
    # chains keep the VALU pipelines busy; the cross-lane/sublane reduction is
    # deferred to the one-time wrapper epilogue.
    acc_ref[0, 0] += jnp.sum(masked_sq.reshape(-1, acc_rows, _LANES), axis=0)
    acc_ref[0, 1] += jnp.sum(m.reshape(-1, acc_rows, _LANES), axis=0)


def _to_lane_dense(x, rows):
    flat = jnp.ravel(x).astype(jnp.float32)
    pad = rows * _LANES - flat.shape[0]
    if pad:
        flat = jnp.pad(flat, (0, pad))  # zeros -> contribute 0 to both sums
    return flat.reshape(rows, _LANES)


@functools.partial(
    jax.jit,
    static_argnames=("block_rows", "num_core_partitions", "min_pallas_elements"))
def masked_mse_loss(predicted, actual, mask, *, block_rows=2048,
                    num_core_partitions=2, min_pallas_elements=0):
    """Masked MSE loss: ((p-a)**2 * mask).sum() / clamp(mask.sum(), 1e-8)."""
    assert predicted.shape == actual.shape == mask.shape
    n = predicted.size

    if n < min_pallas_elements:
        # Tiny-input fallback: a fused XLA elementwise+reduce beats a custom
        # call at sub-vreg sizes (set min_pallas_elements > 0 in production if
        # inputs really are ~8x30).
        p = predicted.astype(jnp.float32)
        a = actual.astype(jnp.float32)
        mk = mask.astype(jnp.float32)
        return jnp.sum((p - a) ** 2 * mk) / jnp.maximum(jnp.sum(mk),
                                                        jnp.float32(1e-8))

    rows_min = _cdiv(n, _LANES)
    # Don't spin up a second core partition unless it has real rows to chew.
    nc = max(1, min(num_core_partitions, rows_min // _SUBLANES))
    tm = min(block_rows, _round_up(_cdiv(rows_min, nc), _SUBLANES))
    tm = _round_up(tm, _SUBLANES)
    n_t = _cdiv(rows_min, nc * tm)
    rows = nc * n_t * tm
    acc_rows = math.gcd(tm, 64)  # 8..64, always divides tm

    pred2d = _to_lane_dense(predicted, rows)
    act2d = _to_lane_dense(actual, rows)
    mask2d = _to_lane_dense(mask, rows)

    in_spec = pl.BlockSpec((tm, _LANES), lambda c, t: (c * n_t + t, 0))

    partials = pl.pallas_call(
        functools.partial(_masked_mse_kernel, acc_rows=acc_rows),
        out_shape=jax.ShapeDtypeStruct((nc, 2, acc_rows, _LANES), jnp.float32),
        grid_spec=pltpu.PrefetchScalarGridSpec(
            num_scalar_prefetch=0,
            grid=(nc, n_t),
            in_specs=[in_spec, in_spec, in_spec],
            # Same block across the reduction axis t -> output block is the
            # VMEM-resident accumulator; written back to HBM once per core.
            out_specs=pl.BlockSpec((1, 2, acc_rows, _LANES),
                                   lambda c, t: (c, 0, 0, 0)),
        ),
        compiler_params=pltpu.CompilerParams(
            dimension_semantics=("parallel", "arbitrary")),
        cost_estimate=pl.CostEstimate(
            flops=5 * rows * _LANES,
            transcendentals=0,
            bytes_accessed=3 * rows * _LANES * 4),
    )(pred2d, act2d, mask2d)

    # Wrapper epilogue: combine per-core lane-dense partials, clamp, divide.
    loss_sum = jnp.sum(partials[:, 0])
    mask_sum = jnp.sum(partials[:, 1])
    return loss_sum / jnp.maximum(mask_sum, jnp.float32(1e-8))


if __name__ == "__main__":
    key = jax.random.PRNGKey(0)
    k1, k2, k3 = jax.random.split(key, 3)

    # Small shapes consistent with facial-keypoint regression:
    # batch=8 samples, 15 keypoints x (x, y) = 30 coordinates each.
    B, F = 8, 30
    predicted = jax.random.normal(k1, (B, F), dtype=jnp.float32)
    actual = jax.random.normal(k2, (B, F), dtype=jnp.float32)
    mask = (jax.random.uniform(k3, (B, F)) > 0.3).astype(jnp.float32)

    loss = masked_mse_loss(predicted, actual, mask)
    loss = jax.block_until_ready(loss)

    ref = ((predicted - actual) ** 2 * mask).sum() / jnp.maximum(mask.sum(),
                                                                 1e-8)
    assert jnp.allclose(loss, ref, rtol=1e-6, atol=1e-6), (loss, ref)

    # Larger check: exercises multi-tile pipelining and both core partitions.
    kb1, kb2, kb3 = jax.random.split(jax.random.PRNGKey(1), 3)
    Bb, Fb = 64, 4096
    pb = jax.random.normal(kb1, (Bb, Fb), dtype=jnp.float32)
    ab = jax.random.normal(kb2, (Bb, Fb), dtype=jnp.float32)
    mb = (jax.random.uniform(kb3, (Bb, Fb)) > 0.5).astype(jnp.float32)
    loss_b = jax.block_until_ready(masked_mse_loss(pb, ab, mb, block_rows=256))
    ref_b = ((pb - ab) ** 2 * mb).sum() / jnp.maximum(mb.sum(), 1e-8)
    assert jnp.allclose(loss_b, ref_b, rtol=1e-4, atol=1e-5), (loss_b, ref_b)

    print("KERNEL_OK")
</pallas_src>

<mosaic_0001>
module attributes {stable_mosaic.version = 11 : i64} {
  func.func @_masked_mse_kernel(%arg0: i32, %arg1: i32, %arg2: memref<8x128xf32, #tpu.memory_space<vmem>>, %arg3: memref<8x128xf32, #tpu.memory_space<vmem>>, %arg4: memref<8x128xf32, #tpu.memory_space<vmem>>, %arg5: memref<1x2x8x128xf32, #tpu.memory_space<vmem>>) attributes {dimension_semantics = [#tpu.dimension_semantics<parallel>, #tpu.dimension_semantics<arbitrary>], iteration_bounds = array<i64: 1, 1>, scalar_prefetch = 0 : i64, scratch_operands = 0 : i64, tpu.core_type = #tpu.core_type<tc>, window_params = [{transform_indices = @transform_0, window_bounds = array<i64: 8, 128>}, {transform_indices = @transform_1, window_bounds = array<i64: 8, 128>}, {transform_indices = @transform_2, window_bounds = array<i64: 8, 128>}, {transform_indices = @transform_3, window_bounds = array<i64: 1, 2, 8, 128>}]} {
    %c0_i32 = arith.constant 0 : i32
    %0 = arith.cmpi eq, %arg1, %c0_i32 : i32
    %1 = arith.extui %0 : i1 to i32
    %c0_i32_0 = arith.constant 0 : i32
    %2 = arith.cmpi ne, %1, %c0_i32_0 : i32
    scf.if %2 {
      %cst_22 = arith.constant 0.000000e+00 : f32
      %25 = vector.broadcast %cst_22 : f32 to vector<1x2x8x128xf32>
      %c0_23 = arith.constant 0 : index
      %c0_24 = arith.constant 0 : index
      %c0_25 = arith.constant 0 : index
      %c0_26 = arith.constant 0 : index
      %26 = vector.load %arg5[%c0_23, %c0_24, %c0_25, %c0_26] : memref<1x2x8x128xf32, #tpu.memory_space<vmem>>, vector<1x2x8x128xf32>
      tpu.vector_store %arg5[%c0_23, %c0_24, %c0_25, %c0_26], %25 {strides = array<i32>} : memref<1x2x8x128xf32, #tpu.memory_space<vmem>>, vector<1x2x8x128xf32>,
    } else {
    }
    %c0 = arith.constant 0 : index
    %c0_1 = arith.constant 0 : index
    %3 = vector.load %arg2[%c0, %c0_1] : memref<8x128xf32, #tpu.memory_space<vmem>>, vector<8x128xf32>
    %c0_2 = arith.constant 0 : index
    %c0_3 = arith.constant 0 : index
    %4 = vector.load %arg3[%c0_2, %c0_3] : memref<8x128xf32, #tpu.memory_space<vmem>>, vector<8x128xf32>
    %5 = arith.subf %3, %4 : vector<8x128xf32>
    %c0_4 = arith.constant 0 : index
    %c0_5 = arith.constant 0 : index
    %6 = vector.load %arg4[%c0_4, %c0_5] : memref<8x128xf32, #tpu.memory_space<vmem>>, vector<8x128xf32>
    %7 = arith.mulf %5, %5 : vector<8x128xf32>
    %8 = arith.mulf %7, %6 : vector<8x128xf32>
    %c0_6 = arith.constant 0 : index
    %c0_7 = arith.constant 0 : index
    %c0_8 = arith.constant 0 : index
    %c0_9 = arith.constant 0 : index
    %9 = vector.load %arg5[%c0_6, %c0_7, %c0_8, %c0_9] : memref<1x2x8x128xf32, #tpu.memory_space<vmem>>, vector<1x1x8x128xf32>
    %10 = vector.shape_cast %9 : vector<1x1x8x128xf32> to vector<8x128xf32>
    %11 = vector.shape_cast %8 : vector<8x128xf32> to vector<1x8x128xf32>
    %cst = arith.constant dense<0.000000e+00> : vector<8x128xf32>
    %12 = vector.multi_reduction <add>, %11, %cst [0] : vector<1x8x128xf32> to vector<8x128xf32>
    %13 = arith.addf %10, %12 : vector<8x128xf32>
    %c0_10 = arith.constant 0 : index
    %c0_11 = arith.constant 0 : index
    %c0_12 = arith.constant 0 : index
    %c0_13 = arith.constant 0 : index
    %14 = vector.load %arg5[%c0_10, %c0_11, %c0_12, %c0_13] : memref<1x2x8x128xf32, #tpu.memory_space<vmem>>, vector<1x1x8x128xf32>
    %15 = vector.shape_cast %14 : vector<1x1x8x128xf32> to vector<8x128xf32>
    %16 = vector.shape_cast %13 : vector<8x128xf32> to vector<1x1x8x128xf32>
    tpu.vector_store %arg5[%c0_10, %c0_11, %c0_12, %c0_13], %16 {strides = array<i32>} : memref<1x2x8x128xf32, #tpu.memory_space<vmem>>, vector<1x1x8x128xf32>,
    %c0_14 = arith.constant 0 : index
    %c1 = arith.constant 1 : index
    %c0_15 = arith.constant 0 : index
    %c0_16 = arith.constant 0 : index
    %17 = vector.load %arg5[%c0_14, %c1, %c0_15, %c0_16] : memref<1x2x8x128xf32, #tpu.memory_space<vmem>>, vector<1x1x8x128xf32>
    %18 = vector.shape_cast %17 : vector<1x1x8x128xf32> to vector<8x128xf32>
    %19 = vector.shape_cast %6 : vector<8x128xf32> to vector<1x8x128xf32>
    %cst_17 = arith.constant dense<0.000000e+00> : vector<8x128xf32>
    %20 = vector.multi_reduction <add>, %19, %cst_17 [0] : vector<1x8x128xf32> to vector<8x128xf32>
    %21 = arith.addf %18, %20 : vector<8x128xf32>
    %c0_18 = arith.constant 0 : index
    %c1_19 = arith.constant 1 : index
    %c0_20 = arith.constant 0 : index
    %c0_21 = arith.constant 0 : index
    %22 = vector.load %arg5[%c0_18, %c1_19, %c0_20, %c0_21] : memref<1x2x8x128xf32, #tpu.memory_space<vmem>>, vector<1x1x8x128xf32>
    %23 = vector.shape_cast %22 : vector<1x1x8x128xf32> to vector<8x128xf32>
    %24 = vector.shape_cast %21 : vector<8x128xf32> to vector<1x1x8x128xf32>
    tpu.vector_store %arg5[%c0_18, %c1_19, %c0_20, %c0_21], %24 {strides = array<i32>} : memref<1x2x8x128xf32, #tpu.memory_space<vmem>>, vector<1x1x8x128xf32>,
    return
  }
  func.func @transform_0(%arg0: i32, %arg1: i32) -> (i32, i32) {
    %c1_i32 = arith.constant 1 : i32
    %0 = arith.muli %arg0, %c1_i32 : i32
    %1 = arith.addi %0, %arg1 : i32
    %c0_i32 = arith.constant 0 : i32
    %c0_i32_0 = arith.constant 0 : i32
    return %1, %c0_i32 : i32, i32
  }
  func.func @transform_1(%arg0: i32, %arg1: i32) -> (i32, i32) {
    %c1_i32 = arith.constant 1 : i32
    %0 = arith.muli %arg0, %c1_i32 : i32
    %1 = arith.addi %0, %arg1 : i32
    %c0_i32 = arith.constant 0 : i32
    %c0_i32_0 = arith.constant 0 : i32
    return %1, %c0_i32 : i32, i32
  }
  func.func @transform_2(%arg0: i32, %arg1: i32) -> (i32, i32) {
    %c1_i32 = arith.constant 1 : i32
    %0 = arith.muli %arg0, %c1_i32 : i32
    %1 = arith.addi %0, %arg1 : i32
    %c0_i32 = arith.constant 0 : i32
    %c0_i32_0 = arith.constant 0 : i32
    return %1, %c0_i32 : i32, i32
  }
  func.func @transform_3(%arg0: i32, %arg1: i32) -> (i32, i32, i32, i32) {
    %c0_i32 = arith.constant 0 : i32
    %c0_i32_0 = arith.constant 0 : i32
    %c0_i32_1 = arith.constant 0 : i32
    %c0_i32_2 = arith.constant 0 : i32
    return %arg0, %c0_i32, %c0_i32_0, %c0_i32_1 : i32, i32, i32, i32
  }
}

</mosaic_0001>

<llo_original>
// kernel: masked_mse_loss.1
$region0: #{masked_mse_loss.1}
  #allocation0 [shape = 'u32[]', space=smem, size = 0x4, offset = 0x4, fixed_abs, tag = 'smem constant byte address 0x4 - core index']
  #allocation1 [shape = 'u32[72,128]{1,0:T(1,128)}', space=vmem, size = 0x9000, scoped, tag = 'internal scratch']
  %s0 = inlined_call_operand.vmem [shape: f32[8,128], index: 0, kind: input, shape index: {}]
  %s1 = inlined_call_operand.vmem [shape: f32[8,128], index: 1, kind: input, shape index: {}]
  %s2 = inlined_call_operand.vmem [shape: f32[8,128], index: 2, kind: input, shape index: {}]
  %s3 = inlined_call_operand.vmem [shape: f32[1,2,8,128], index: 3, kind: output, shape index: {}]
  %s4 = sld [smem:[#allocation0]]
  $region26: #{masked_mse_loss.1} parent=0
    _
  %s6 = ssub.s32 1, %s4
  %s7 = scalar_select 0, %s6, %s4
  // Predicated region
  $region2: #{masked_mse_loss.1} parent=0 // pred_check
    _
  $region3: #{masked_mse_loss.1} parent=0 // pred_check_branch
    %9 = sbr.rel (0) target = $region5
  $region4: #{masked_mse_loss.1} parent=0 // pred_region
    %s10 = sadd.s32 0, 0
    %p11 = scmp.lt.s32.totalorder %s10, 0
    %s12 = scalar_select %p11, %s10, 0
    %s13 = smul.addr %s12, 8
    %s14 = scalar_lea.vmem %s0, %s13
    %s15 = sadd.s32 0, 0
  $region5: #{masked_mse_loss.1} parent=0 // pred_fallthru
    _
  // Predicated region
  $region6: #{masked_mse_loss.1} parent=0 // pred_check
    _
  $region7: #{masked_mse_loss.1} parent=0 // pred_check_branch
    %17 = sbr.rel (0) target = $region9
  $region8: #{masked_mse_loss.1} parent=0 // pred_region
    %s18 = sadd.s32 0, 0
    %p19 = scmp.lt.s32.totalorder %s18, 0
    %s20 = scalar_select %p19, %s18, 0
    %s21 = smul.addr %s20, 8
    %s22 = scalar_lea.vmem %s1, %s21
    %s23 = sadd.s32 0, 0
  $region9: #{masked_mse_loss.1} parent=0 // pred_fallthru
    _
  // Predicated region
  $region10: #{masked_mse_loss.1} parent=0 // pred_check
    _
  $region11: #{masked_mse_loss.1} parent=0 // pred_check_branch
    %25 = sbr.rel (0) target = $region13
  $region12: #{masked_mse_loss.1} parent=0 // pred_region
    %s26 = sadd.s32 0, 0
    %p27 = scmp.lt.s32.totalorder %s26, 0
    %s28 = scalar_select %p27, %s26, 0
    %s29 = smul.addr %s28, 8
    %s30 = scalar_lea.vmem %s2, %s29
    %s31 = sadd.s32 0, 0
  $region13: #{masked_mse_loss.1} parent=0 // pred_fallthru
    _
  %s32 = sadd.s32 0, 0
  %p33 = scmp.lt.s32.totalorder %s32, 0
  %s34 = scalar_select %p33, %s32, 0
  %s35 = smul.addr %s34, 8
  %s36 = scalar_lea.vmem %s0, %s35
  %s37 = sadd.s32 0, 0
  %p38 = scmp.lt.s32.totalorder %s37, 0
  %s39 = scalar_select %p38, %s37, 0
  %s40 = smul.addr %s39, 8
  %s41 = scalar_lea.vmem %s1, %s40
  %s42 = sadd.s32 0, 0
  %p43 = scmp.lt.s32.totalorder %s42, 0
  %s44 = scalar_select %p43, %s42, 0
  %s45 = smul.addr %s44, 8
  %s46 = scalar_lea.vmem %s2, %s45
  %s47 = sadd.s32 0, 0
  %p48 = scmp.lt.s32.totalorder %s47, 0
  %s49 = scalar_select %p48, %s47, 0
  %s50 = smul.addr %s49, 8
  %s51 = scalar_lea.vmem %s0, %s50
  %s52 = sadd.s32 0, 0
  %s53 = sadd.s32 0, 0
  %p54 = scmp.lt.s32.totalorder %s53, 0
  %s55 = scalar_select %p54, %s53, 0
  %s56 = smul.addr %s55, 8
  %s57 = scalar_lea.vmem %s1, %s56
  %s58 = sadd.s32 0, 0
  %s59 = sadd.s32 0, 0
  %p60 = scmp.lt.s32.totalorder %s59, 0
  %s61 = scalar_select %p60, %s59, 0
  %s62 = smul.addr %s61, 8
  %s63 = scalar_lea.vmem %s2, %s62
  %s64 = sadd.s32 0, 0
  %p65 = scmp.eq.s32.totalorder 0, 0
  // Predicated region
  $region14: #{masked_mse_loss.1} parent=0 // pred_check
    %p66 = pneg %p65
  $region15: #{masked_mse_loss.1} parent=0 // pred_check_branch
    %68 = sbr.rel (%p66) target = $region17
  $region16: #{masked_mse_loss.1} parent=0 // pred_region
    %69 = vst [vmem:[%s3] sm:$0xff] 0.0
    %70 = vst [vmem:[%s3 + $0x8] sm:$0xff] 0.0
  $region17: #{masked_mse_loss.1} parent=0 // pred_fallthru
    _
  %v71 = vld [vmem:[%s51] sm:$0xff]
  %v72 = vld [vmem:[%s57] sm:$0xff]
  %v73 = vsub.f32 %v71, %v72
  %v74 = vld [vmem:[%s63] sm:$0xff]
  %v75 = vmul.f32 %v73, %v73
  %v76 = vmul.f32 %v75, %v74
  %v77 = vld [vmem:[%s3] sm:$0xff]
  %v78 = vadd.f32 %v76, 0.0
  %v79 = vadd.f32 %v77, %v78
  %80 = vst [vmem:[%s3] sm:$0xff] %v79
  %s81 = scalar_lea.vmem %s3, 8
  %v82 = vld [vmem:[%s81] sm:$0xff]
  %v83 = vadd.f32 %v74, 0.0
  %v84 = vadd.f32 %v82, %v83
  %85 = vst [vmem:[%s81] sm:$0xff] %v84
  // Predicated region
  $region18: #{masked_mse_loss.1} parent=0 // pred_check
    _
  $region19: #{masked_mse_loss.1} parent=0 // pred_check_branch
    %87 = sbr.rel (0) target = $region21
  $region20: #{masked_mse_loss.1} parent=0 // pred_region
    _
  $region21: #{masked_mse_loss.1} parent=0 // pred_fallthru
    _
  // Predicated region
  $region22: #{masked_mse_loss.1} parent=0 // pred_check
    _
  $region23: #{masked_mse_loss.1} parent=0 // pred_check_branch
    %89 = sbr.rel (0) target = $region25
  $region24: #{masked_mse_loss.1} parent=0 // pred_region
    _
  $region25: #{masked_mse_loss.1} parent=0 // pred_fallthru
    _

</llo_original>
